<compile_context>
chip_gen: v5e
topology: v5e:2x2
jax: 0.10.0
libtpu: 0.0.40
codegen_flags: <defaults>
</compile_context>

<pallas_src>
import jax
import jax.numpy as jnp
from jax.experimental import pallas as pl
from jax.experimental.pallas import tpu as pltpu


def _round_up(v, m):
    return (v + m - 1) // m * m


def _pick_tile(n_p, max_tile=1024):
    """Largest multiple-of-128 divisor of n_p that is <= max_tile."""
    best = 128
    t = 128
    limit = min(n_p, max_tile)
    while t <= limit:
        if n_p % t == 0:
            best = t
        t += 128
    return best


# ------------------------------------------------------------------ phase 1 -
def _assign_kernel(x_ref, w1_ref, b1_ref, w2_ref, b2_ref, s32_ref, s16_ref):
    # h = relu(x @ W1 + b1)    (bf16 operands, f32 accumulate, f32 bias/relu)
    h = jnp.dot(x_ref[...], w1_ref[...], preferred_element_type=jnp.float32)
    h = jnp.maximum(h + b1_ref[...], 0.0)
    # logits = h @ W2 + b2     (padded cluster columns carry a -1e30 bias)
    logits = jnp.dot(h.astype(jnp.bfloat16), w2_ref[...],
                     preferred_element_type=jnp.float32)
    logits = logits + b2_ref[...]
    m = jnp.max(logits, axis=-1, keepdims=True)
    e = jnp.exp(logits - m)
    denom = jnp.sum(e, axis=-1, keepdims=True)
    # Exact reciprocal: denom is only (T, 1), so this is essentially free and
    # keeps row sums exactly normalized.
    s = e * pl.reciprocal(denom, approx=False)
    s32_ref[...] = s
    s16_ref[...] = s.astype(jnp.bfloat16)


# ------------------------------------------------------------------ phase 2 -
def _modularity_kernel(adj_ref, s_k_ref, s_i_ref, rownum_ref, acc_ref):
    k = pl.program_id(1)

    @pl.when(k == 0)
    def _():
        acc_ref[...] = jnp.zeros_like(acc_ref)

    # acc += A[i-tile, k-tile] @ S[k-tile]   (bf16 x bf16 -> f32 on the MXU)
    acc_ref[...] += jnp.dot(adj_ref[...], s_k_ref[...],
                            preferred_element_type=jnp.float32)

    @pl.when(k == pl.num_programs(1) - 1)
    def _():
        # row partial of the modularity numerator: sum_j (A@S)[r, j] * S[r, j]
        rownum_ref[...] = jnp.sum(
            acc_ref[...] * s_i_ref[...].astype(jnp.float32),
            axis=-1, keepdims=True)


# ------------------------------------------------------------------ wrapper -
def dmon_forward(x, w1, b1, w2, b2, edge_index):
    """DMoN forward.  Weights stored [in, out]: x @ W + b == PyTorch x @ W.T + b."""
    N, D = x.shape
    H = w1.shape[1]
    C = w2.shape[1]
    E = int(edge_index.shape[1])

    # Lane-dense padded sizes.  N pads only to 128; tile chosen from N_p.
    D_p = _round_up(D, 128)
    H_p = _round_up(H, 128)
    C_p = _round_up(C, 128)
    N_p = _round_up(N, 128)
    T = _pick_tile(N_p)
    n_tiles = N_p // T

    f32, bf16 = jnp.float32, jnp.bfloat16

    # bf16 MXU operands (f32 accumulate inside the kernel); biases stay f32.
    x_p = jnp.zeros((N_p, D_p), bf16).at[:N, :D].set(x.astype(bf16))
    w1_p = jnp.zeros((D_p, H_p), bf16).at[:D, :H].set(w1.astype(bf16))
    w2_p = jnp.zeros((H_p, C_p), bf16).at[:H, :C].set(w2.astype(bf16))
    b1_p = jnp.zeros((1, H_p), f32).at[0, :H].set(b1.astype(f32))
    # -1e30 bias on padded cluster columns -> softmax mass exactly 0 there.
    b2_p = jnp.full((1, C_p), -1e30, f32).at[0, :C].set(b2.astype(f32))

    # Dense adjacency (to_dense_adj semantics) built *directly* in bf16
    # (edge multiplicities are small integers -> exact in bf16, and no f32
    # N^2 intermediate is ever materialized).
    src, dst = edge_index[0], edge_index[1]
    adj = jnp.zeros((N_p, N_p), bf16).at[src, dst].add(1.0)

    # ---- phase 1: cluster assignments -------------------------------------
    def resident(shape):
        # Constant-index block: single-buffered (no wasted VMEM double buffer).
        return pl.BlockSpec(shape, lambda i: (0, 0),
                            pipeline_mode=pl.Buffered(1))

    s32_pad, s16_pad = pl.pallas_call(
        _assign_kernel,
        out_shape=(jax.ShapeDtypeStruct((N_p, C_p), f32),
                   jax.ShapeDtypeStruct((N_p, C_p), bf16)),
        grid=(n_tiles,),
        in_specs=[
            pl.BlockSpec((T, D_p), lambda i: (i, 0)),   # x row tiles
            resident((D_p, H_p)),                       # W1 (resident, 1-buf)
            resident((1, H_p)),                         # b1
            resident((H_p, C_p)),                       # W2
            resident((1, C_p)),                         # b2
        ],
        out_specs=(pl.BlockSpec((T, C_p), lambda i: (i, 0)),
                   pl.BlockSpec((T, C_p), lambda i: (i, 0))),
        compiler_params=pltpu.CompilerParams(
            dimension_semantics=("parallel",)),
    )(x_p, w1_p, b1_p, w2_p, b2_p)

    # ---- phase 2: per-row modularity numerator -----------------------------
    # S is *streamed* (k-indexed tile for the matmul, i-indexed tile for the
    # finalize) instead of held resident, so VMEM use is tile-sized only and
    # no vmem_limit override is needed on any generation.
    row_num = pl.pallas_call(
        _modularity_kernel,
        out_shape=jax.ShapeDtypeStruct((N_p, 1), f32),
        grid=(n_tiles, n_tiles),                          # reduction axis last
        in_specs=[
            pl.BlockSpec((T, T), lambda i, k: (i, k)),    # adj tile stream
            pl.BlockSpec((T, C_p), lambda i, k: (k, 0)),  # S[k-tile] (matmul)
            pl.BlockSpec((T, C_p), lambda i, k: (i, 0)),  # S[i-tile] (finalize)
        ],
        out_specs=pl.BlockSpec((T, 1), lambda i, k: (i, 0)),
        scratch_shapes=[pltpu.VMEM((T, C_p), jnp.float32)],
        compiler_params=pltpu.CompilerParams(
            dimension_semantics=("parallel", "arbitrary")),
    )(adj, s16_pad, s16_pad)

    # den = adj.sum() == number of (directed) edge entries, known statically.
    den = float(E)
    loss = -(jnp.sum(row_num) / den)
    return s32_pad[:N, :C], loss


if __name__ == "__main__":
    # Small, deterministic example.
    N = 16
    input_dim = 32
    hidden_dim = 32
    num_clusters = 4

    key = jax.random.PRNGKey(0)
    kx, kw1, kb1, kw2, kb2 = jax.random.split(key, 5)

    x = jax.random.normal(kx, (N, input_dim), jnp.float32)
    # nn.Linear-style init; stored as [in, out] for x @ W.
    w1 = jax.random.normal(kw1, (input_dim, hidden_dim), jnp.float32) * 0.1
    b1 = jax.random.normal(kb1, (hidden_dim,), jnp.float32) * 0.1
    w2 = jax.random.normal(kw2, (hidden_dim, num_clusters), jnp.float32) * 0.1
    b2 = jax.random.normal(kb2, (num_clusters,), jnp.float32) * 0.1

    # Ring graph, both directions (edge_index: [2, E]).
    s_idx = jnp.arange(N, dtype=jnp.int32)
    d_idx = (s_idx + 1) % N
    edge_index = jnp.stack(
        [jnp.concatenate([s_idx, d_idx]), jnp.concatenate([d_idx, s_idx])],
        axis=0)

    assignments, mod_loss = dmon_forward(x, w1, b1, w2, b2, edge_index)
    jax.block_until_ready((assignments, mod_loss))

    # Pure-JAX reference check.
    h_ref = jax.nn.relu(x @ w1 + b1)
    s_ref = jax.nn.softmax(h_ref @ w2 + b2, axis=1)
    adj_ref = jnp.zeros((N, N), jnp.float32).at[
        edge_index[0], edge_index[1]].add(1.0)
    loss_ref = -jnp.trace((s_ref @ s_ref.T).T @ adj_ref) / adj_ref.sum()

    assert assignments.shape == (N, num_clusters)
    assert jnp.allclose(jnp.sum(assignments, axis=1), 1.0, atol=1e-3)
    assert jnp.allclose(assignments, s_ref, atol=1e-2)
    assert jnp.isfinite(mod_loss)
    assert jnp.allclose(mod_loss, loss_ref, rtol=5e-2, atol=1e-3)

    print("KERNEL_OK")
</pallas_src>

<mosaic_0001>
module attributes {stable_mosaic.version = 11 : i64} {
  func.func @_assign_kernel(%arg0: i32, %arg1: memref<128x128xbf16, #tpu.memory_space<vmem>>, %arg2: memref<128x128xbf16, #tpu.memory_space<vmem>>, %arg3: memref<1x128xf32, #tpu.memory_space<vmem>>, %arg4: memref<128x128xbf16, #tpu.memory_space<vmem>>, %arg5: memref<1x128xf32, #tpu.memory_space<vmem>>, %arg6: memref<128x128xf32, #tpu.memory_space<vmem>>, %arg7: memref<128x128xbf16, #tpu.memory_space<vmem>>) attributes {dimension_semantics = [#tpu.dimension_semantics<parallel>], iteration_bounds = array<i64: 1>, scalar_prefetch = 0 : i64, scratch_operands = 0 : i64, tpu.core_type = #tpu.core_type<tc>, window_params = [{transform_indices = @transform_0, window_bounds = array<i64: 128, 128>}, {pipeline_mode = #tpu.pipeline_mode<synchronous>, transform_indices = @transform_1, window_bounds = array<i64: 128, 128>}, {pipeline_mode = #tpu.pipeline_mode<synchronous>, transform_indices = @transform_2, window_bounds = array<i64: 1, 128>}, {pipeline_mode = #tpu.pipeline_mode<synchronous>, transform_indices = @transform_3, window_bounds = array<i64: 128, 128>}, {pipeline_mode = #tpu.pipeline_mode<synchronous>, transform_indices = @transform_4, window_bounds = array<i64: 1, 128>}, {transform_indices = @transform_5, window_bounds = array<i64: 128, 128>}, {transform_indices = @transform_6, window_bounds = array<i64: 128, 128>}]} {
    %c0 = arith.constant 0 : index
    %c0_0 = arith.constant 0 : index
    %0 = vector.load %arg1[%c0, %c0_0] : memref<128x128xbf16, #tpu.memory_space<vmem>>, vector<128x128xbf16>
    %c0_1 = arith.constant 0 : index
    %c0_2 = arith.constant 0 : index
    %1 = vector.load %arg2[%c0_1, %c0_2] : memref<128x128xbf16, #tpu.memory_space<vmem>>, vector<128x128xbf16>
    %cst = arith.constant dense<0.000000e+00> : vector<128x128xf32>
    %2 = tpu.matmul %0, %1, %cst {dimension_numbers = #tpu.dot_dimension_numbers<[1], [0], [0], [1], [0, 0, 1, 1], [], []>} : vector<128x128xbf16>, vector<128x128xbf16>, vector<128x128xf32> -> vector<128x128xf32>
    %c0_3 = arith.constant 0 : index
    %c0_4 = arith.constant 0 : index
    %3 = vector.load %arg3[%c0_3, %c0_4] : memref<1x128xf32, #tpu.memory_space<vmem>>, vector<1x128xf32>
    %4 = vector.broadcast %3 : vector<1x128xf32> to vector<128x128xf32>
    %5 = arith.addf %2, %4 : vector<128x128xf32>
    %cst_5 = arith.constant 0.000000e+00 : f32
    %6 = vector.broadcast %cst_5 : f32 to vector<128x128xf32>
    %7 = arith.maximumf %5, %6 : vector<128x128xf32>
    %8 = arith.truncf %7 : vector<128x128xf32> to vector<128x128xbf16>
    %c0_6 = arith.constant 0 : index
    %c0_7 = arith.constant 0 : index
    %9 = vector.load %arg4[%c0_6, %c0_7] : memref<128x128xbf16, #tpu.memory_space<vmem>>, vector<128x128xbf16>
    %cst_8 = arith.constant dense<0.000000e+00> : vector<128x128xf32>
    %10 = tpu.matmul %8, %9, %cst_8 {dimension_numbers = #tpu.dot_dimension_numbers<[1], [0], [0], [1], [0, 0, 1, 1], [], []>} : vector<128x128xbf16>, vector<128x128xbf16>, vector<128x128xf32> -> vector<128x128xf32>
    %c0_9 = arith.constant 0 : index
    %c0_10 = arith.constant 0 : index
    %11 = vector.load %arg5[%c0_9, %c0_10] : memref<1x128xf32, #tpu.memory_space<vmem>>, vector<1x128xf32>
    %12 = vector.broadcast %11 : vector<1x128xf32> to vector<128x128xf32>
    %13 = arith.addf %10, %12 : vector<128x128xf32>
    %cst_11 = arith.constant dense<0xFF800000> : vector<128xf32>
    %14 = vector.multi_reduction <maximumf>, %13, %cst_11 [1] : vector<128x128xf32> to vector<128xf32>
    %15 = vector.shape_cast %14 : vector<128xf32> to vector<128x1xf32>
    %16 = vector.broadcast %15 : vector<128x1xf32> to vector<128x128xf32>
    %17 = arith.subf %13, %16 : vector<128x128xf32>
    %18 = math.exp %17 : vector<128x128xf32>
    %cst_12 = arith.constant dense<0.000000e+00> : vector<128xf32>
    %19 = vector.multi_reduction <add>, %18, %cst_12 [1] : vector<128x128xf32> to vector<128xf32>
    %20 = vector.shape_cast %19 : vector<128xf32> to vector<128x1xf32>
    %21 = tpu.reciprocal %20 : vector<128x1xf32> -> vector<128x1xf32>
    %22 = vector.broadcast %21 : vector<128x1xf32> to vector<128x128xf32>
    %23 = arith.mulf %18, %22 : vector<128x128xf32>
    %c0_13 = arith.constant 0 : index
    %c0_14 = arith.constant 0 : index
    %24 = vector.load %arg6[%c0_13, %c0_14] : memref<128x128xf32, #tpu.memory_space<vmem>>, vector<128x128xf32>
    tpu.vector_store %arg6[%c0_13, %c0_14], %23 {strides = array<i32>} : memref<128x128xf32, #tpu.memory_space<vmem>>, vector<128x128xf32>,
    %25 = arith.truncf %23 : vector<128x128xf32> to vector<128x128xbf16>
    %c0_15 = arith.constant 0 : index
    %c0_16 = arith.constant 0 : index
    %26 = vector.load %arg7[%c0_15, %c0_16] : memref<128x128xbf16, #tpu.memory_space<vmem>>, vector<128x128xbf16>
    tpu.vector_store %arg7[%c0_15, %c0_16], %25 {strides = array<i32>} : memref<128x128xbf16, #tpu.memory_space<vmem>>, vector<128x128xbf16>,
    return
  }
  func.func @transform_0(%arg0: i32) -> (i32, i32) {
    %c0_i32 = arith.constant 0 : i32
    %c0_i32_0 = arith.constant 0 : i32
    return %arg0, %c0_i32 : i32, i32
  }
  func.func @transform_1(%arg0: i32) -> (i32, i32) {
    %c0_i32 = arith.constant 0 : i32
    %c0_i32_0 = arith.constant 0 : i32
    %c0_i32_1 = arith.constant 0 : i32
    return %c0_i32, %c0_i32_0 : i32, i32
  }
  func.func @transform_2(%arg0: i32) -> (i32, i32) {
    %c0_i32 = arith.constant 0 : i32
    %c0_i32_0 = arith.constant 0 : i32
    %c0_i32_1 = arith.constant 0 : i32
    return %c0_i32, %c0_i32_0 : i32, i32
  }
  func.func @transform_3(%arg0: i32) -> (i32, i32) {
    %c0_i32 = arith.constant 0 : i32
    %c0_i32_0 = arith.constant 0 : i32
    %c0_i32_1 = arith.constant 0 : i32
    return %c0_i32, %c0_i32_0 : i32, i32
  }
  func.func @transform_4(%arg0: i32) -> (i32, i32) {
    %c0_i32 = arith.constant 0 : i32
    %c0_i32_0 = arith.constant 0 : i32
    %c0_i32_1 = arith.constant 0 : i32
    return %c0_i32, %c0_i32_0 : i32, i32
  }
  func.func @transform_5(%arg0: i32) -> (i32, i32) {
    %c0_i32 = arith.constant 0 : i32
    %c0_i32_0 = arith.constant 0 : i32
    return %arg0, %c0_i32 : i32, i32
  }
  func.func @transform_6(%arg0: i32) -> (i32, i32) {
    %c0_i32 = arith.constant 0 : i32
    %c0_i32_0 = arith.constant 0 : i32
    return %arg0, %c0_i32 : i32, i32
  }
}

</mosaic_0001>

<llo_original>
// kernel: tpu_custom_call.1
$region0: #{tpu_custom_call.1}
  #allocation0 [shape = 'u32[]', space=smem, size = 0x4, offset = 0x4, fixed_abs, tag = 'smem constant byte address 0x4 - core index']
  #allocation1 [shape = 'u32[72,128]{1,0:T(1,128)}', space=vmem, size = 0x9000, scoped, tag = 'internal scratch']
  %s0 = inlined_call_operand.hbm [shape: bf16[128,128], index: 0, kind: input, shape index: {}]
  %s1 = inlined_call_operand.hbm [shape: bf16[128,128], index: 1, kind: input, shape index: {}]
  %s2 = inlined_call_operand.vmem [shape: f32[1,128], index: 2, kind: input, shape index: {}]
  %s3 = inlined_call_operand.hbm [shape: bf16[128,128], index: 3, kind: input, shape index: {}]
  %s4 = inlined_call_operand.vmem [shape: f32[1,128], index: 4, kind: input, shape index: {}]
  %s5 = inlined_call_operand.hbm [shape: f32[128,128], index: 5, kind: output, shape index: {0}]
  %s6 = inlined_call_operand.hbm [shape: bf16[128,128], index: 6, kind: output, shape index: {1}]
  %7 = xla_tuple %s5, %s6
  %s8 = sld [smem:[#allocation0]]
  $region50: #{tpu_custom_call.1} parent=0
    _
  %s10 = ssub.s32 1, %s8
  %s11 = scalar_select 0, %s10, %s8
  $region1: #{tpu_custom_call.1} parent=0
    #allocation2 [shape = 'u8[32768]{0}', space=vmem, size = 0x8000, scoped, tag = 'input window, operand 0, single buffered']
    #allocation3 [shape = 's32[1]{0}', space=sflag, size = 0x4, scoped, tag = 'scoped memory for tpu_custom_call.1']
    #allocation4 [shape = 's32[1]{0}', space=sflag, size = 0x4, scoped, tag = 'scoped memory for tpu_custom_call.1']
    #allocation5 [shape = 'u8[32768]{0}', space=vmem, size = 0x8000, scoped, tag = 'input window, operand 1, single buffered']
    #allocation6 [shape = 's32[1]{0}', space=sflag, size = 0x4, scoped, tag = 'scoped memory for tpu_custom_call.1']
    #allocation7 [shape = 'u8[32768]{0}', space=vmem, size = 0x8000, scoped, tag = 'input window, operand 3, single buffered']
    #allocation8 [shape = 'u8[65536]{0}', space=vmem, size = 0x10000, scoped, tag = 'output window, operand 0, single buffered']
    #allocation9 [shape = 'u8[32768]{0}', space=vmem, size = 0x8000, scoped, tag = 'output window, operand 1, single buffered']
    #allocation10 [shape = 's32[1]{0}', space=sflag, size = 0x4, scoped, tag = 'scoped memory for tpu_custom_call.1']
    %12 = vsyncpa [#allocation3], 0
    %13 = vsyncpa [#allocation6], 0
    %14 = vsyncpa [#allocation4], 0
    %15 = vsyncpa [#allocation10], 0
    // Predicated region
    $region2: #{tpu_custom_call.1} parent=1 // pred_check
      _
    $region3: #{tpu_custom_call.1} parent=1 // pred_check_branch
      %17 = sbr.rel (0) target = $region5
    $region4: #{tpu_custom_call.1} parent=1 // pred_region
      %19 = vsyncadd [#allocation3], 0
      %s20 = sshll.u32 %s0, 4
      %s21 = int_to_ptr.hbm [resolvable:$true] %s20
      %s22 = sshll.u32 [#allocation2], 4
      %s23 = int_to_ptr.vmem [resolvable:$true] %s22
      %28 = dma.hbm_to_vmem [thread:$0]  %s21, 1024, %s23, [#allocation3], 64, 64, 4
    $region5: #{tpu_custom_call.1} parent=1 // pred_fallthru
      _
    // Predicated region
    $region6: #{tpu_custom_call.1} parent=1 // pred_check
      _
    $region7: #{tpu_custom_call.1} parent=1 // pred_check_branch
      %30 = sbr.rel (0) target = $region9
    $region8: #{tpu_custom_call.1} parent=1 // pred_region
      %32 = vsyncadd [#allocation6], 0
      %s33 = sshll.u32 %s1, 4
      %s34 = int_to_ptr.hbm [resolvable:$true] %s33
      %s35 = sshll.u32 [#allocation5], 4
      %s36 = int_to_ptr.vmem [resolvable:$true] %s35
      %41 = dma.hbm_to_vmem [thread:$0]  %s34, 1024, %s36, [#allocation6], 64, 64, 4
    $region9: #{tpu_custom_call.1} parent=1 // pred_fallthru
      _
    // Predicated region
    $region10: #{tpu_custom_call.1} parent=1 // pred_check
      _
    $region11: #{tpu_custom_call.1} parent=1 // pred_check_branch
      %43 = sbr.rel (0) target = $region13
    $region12: #{tpu_custom_call.1} parent=1 // pred_region
      _
    $region13: #{tpu_custom_call.1} parent=1 // pred_fallthru
      _
    // Predicated region
    $region14: #{tpu_custom_call.1} parent=1 // pred_check
      _
    $region15: #{tpu_custom_call.1} parent=1 // pred_check_branch
      %45 = sbr.rel (0) target = $region17
    $region16: #{tpu_custom_call.1} parent=1 // pred_region
      %47 = vsyncadd [#allocation6], 0
      %s48 = sshll.u32 %s3, 4
      %s49 = int_to_ptr.hbm [resolvable:$true] %s48
      %s50 = sshll.u32 [#allocation7], 4
      %s51 = int_to_ptr.vmem [resolvable:$true] %s50
      %56 = dma.hbm_to_vmem [thread:$0]  %s49, 1024, %s51, [#allocation6], 64, 64, 4
    $region17: #{tpu_custom_call.1} parent=1 // pred_fallthru
      _
    // Predicated region
    $region18: #{tpu_custom_call.1} parent=1 // pred_check
      _
    $region19: #{tpu_custom_call.1} parent=1 // pred_check_branch
      %58 = sbr.rel (0) target = $region21
    $region20: #{tpu_custom_call.1} parent=1 // pred_region
      _
    $region21: #{tpu_custom_call.1} parent=1 // pred_fallthru
      _
    // Predicated region
    $region22: #{tpu_custom_call.1} parent=1 // pred_check
      _
    $region23: #{tpu_custom_call.1} parent=1 // pred_check_branch
      %60 = sbr.rel (0) target = $region25
    $region24: #{tpu_custom_call.1} parent=1 // pred_region
      %62 = dma.done [#allocation3], 1024
    $region25: #{tpu_custom_call.1} parent=1 // pred_fallthru
      _
    // Predicated region
    $region26: #{tpu_custom_call.1} parent=1 // pred_check
      _
    $region27: #{tpu_custom_call.1} parent=1 // pred_check_branch
      %64 = sbr.rel (0) target = $region29
    $region28: #{tpu_custom_call.1} parent=1 // pred_region
      %66 = dma.done [#allocation6], 1024
    $region29: #{tpu_custom_call.1} parent=1 // pred_fallthru
      _
    // Predicated region
    $region30: #{tpu_custom_call.1} parent=1 // pred_check
      _
    $region31: #{tpu_custom_call.1} parent=1 // pred_check_branch
      %68 = sbr.rel (0) target = $region33
    $region32: #{tpu_custom_call.1} parent=1 // pred_region
      %70 = dma.done [#allocation6], 1024
    $region33: #{tpu_custom_call.1} parent=1 // pred_fallthru
      _
    %v71 = vld [vmem:[#allocation2] sm:$0xf]
    %v72 = vld [vmem:[#allocation2 + $0x4] sm:$0xf]
    %v73 = vld [vmem:[#allocation2 + $0x8] sm:$0xf]
    %v74 = vld [vmem:[#allocation2 + $0xc] sm:$0xf]
    %v75 = vld [vmem:[#allocation2 + $0x10] sm:$0xf]
    %v76 = vld [vmem:[#allocation2 + $0x14] sm:$0xf]
    %v77 = vld [vmem:[#allocation2 + $0x18] sm:$0xf]
    %v78 = vld [vmem:[#allocation2 + $0x1c] sm:$0xf]
    %v79 = vld [vmem:[#allocation2 + $0x20] sm:$0xf]
    %v80 = vld [vmem:[#allocation2 + $0x24] sm:$0xf]
    %v81 = vld [vmem:[#allocation2 + $0x28] sm:$0xf]
    %v82 = vld [vmem:[#allocation2 + $0x2c] sm:$0xf]
    %v83 = vld [vmem:[#allocation2 + $0x30] sm:$0xf]
    %v84 = vld [vmem:[#allocation2 + $0x34] sm:$0xf]
    %v85 = vld [vmem:[#allocation2 + $0x38] sm:$0xf]
    %v86 = vld [vmem:[#allocation2 + $0x3c] sm:$0xf]
    %v87 = vld [vmem:[#allocation5] sm:$0xf]
    %v88 = vld [vmem:[#allocation5 + $0x4] sm:$0xf]
    %v89 = vld [vmem:[#allocation5 + $0x8] sm:$0xf]
    %v90 = vld [vmem:[#allocation5 + $0xc] sm:$0xf]
    %v91 = vld [vmem:[#allocation5 + $0x10] sm:$0xf]
    %v92 = vld [vmem:[#allocation5 + $0x14] sm:$0xf]
    %v93 = vld [vmem:[#allocation5 + $0x18] sm:$0xf]
    %v94 = vld [vmem:[#allocation5 + $0x1c] sm:$0xf]
    %v95 = vld [vmem:[#allocation5 + $0x20] sm:$0xf]
    %v96 = vld [vmem:[#allocation5 + $0x24] sm:$0xf]
    %v97 = vld [vmem:[#allocation5 + $0x28] sm:$0xf]
    %v98 = vld [vmem:[#allocation5 + $0x2c] sm:$0xf]
    %v99 = vld [vmem:[#allocation5 + $0x30] sm:$0xf]
    %v100 = vld [vmem:[#allocation5 + $0x34] sm:$0xf]
    %v101 = vld [vmem:[#allocation5 + $0x38] sm:$0xf]
    %v102 = vld [vmem:[#allocation5 + $0x3c] sm:$0xf]
    %v103 = vld [vmem:[%s2] sm:$0x1]
    %v105 = vperm.slane %v103, 0
    %v123 = vunpack.c.l.b16 %v71
    %v124 = vunpack.c.l.b16 %v72
    %v125 = vunpack.c.l.b16 %v73
    %v126 = vunpack.c.l.b16 %v74
    %v127 = vunpack.c.l.b16 %v75
    %v128 = vunpack.c.l.b16 %v76
    %v129 = vunpack.c.l.b16 %v77
    %v130 = vunpack.c.l.b16 %v78
    %v131 = vunpack.c.l.b16 %v79
    %v132 = vunpack.c.l.b16 %v80
    %v133 = vunpack.c.l.b16 %v81
    %v134 = vunpack.c.l.b16 %v82
    %v135 = vunpack.c.l.b16 %v83
    %v136 = vunpack.c.l.b16 %v84
    %v137 = vunpack.c.l.b16 %v85
    %v138 = vunpack.c.l.b16 %v86
    %v139 = vpack.c.b16 %v124, %v123
    %v140 = vpack.c.b16 %v126, %v125
    %v141 = vpack.c.b16 %v128, %v127
    %v142 = vpack.c.b16 %v130, %v129
    %v143 = vpack.c.b16 %v132, %v131
    %v144 = vpack.c.b16 %v134, %v133
    %v145 = vpack.c.b16 %v136, %v135
    %v146 = vpack.c.b16 %v138, %v137
    %v171 = vunpack.c.l.b16 %v87
    %v172 = vunpack.c.l.b16 %v88
    %v173 = vunpack.c.l.b16 %v89
    %v174 = vunpack.c.l.b16 %v90
    %v175 = vunpack.c.l.b16 %v91
    %v176 = vunpack.c.l.b16 %v92
    %v177 = vunpack.c.l.b16 %v93
    %v178 = vunpack.c.l.b16 %v94
    %v179 = vunpack.c.l.b16 %v95
    %v180 = vunpack.c.l.b16 %v96
    %v181 = vunpack.c.l.b16 %v97
    %v182 = vunpack.c.l.b16 %v98
    %v183 = vunpack.c.l.b16 %v99
    %v184 = vunpack.c.l.b16 %v100
    %v185 = vunpack.c.l.b16 %v101
    %v186 = vunpack.c.l.b16 %v102
    %v187 = vpack.c.b16 %v172, %v171
    %v188 = vpack.c.b16 %v174, %v173
    %v189 = vpack.c.b16 %v176, %v175
    %v190 = vpack.c.b16 %v178, %v177
    %v191 = vpack.c.b16 %v180, %v179
    %v192 = vpack.c.b16 %v182, %v181
    %v193 = vpack.c.b16 %v184, %v183
    %v194 = vpack.c.b16 %v186, %v185
    %203 = vmatpush.bf16.msra.mxu0 %v194
    %204 = vmatpush.bf16.msra.mxu0 %v193
    %205 = vmatpush.bf16.msra.mxu0 %v192
    %206 = vmatpush.bf16.msra.mxu0 %v191
    %207 = vmatpush.bf16.msra.mxu0 %v190
    %208 = vmatpush.bf16.msra.mxu0 %v189
    %209 = vmatpush.bf16.msra.mxu0 %v188
    %210 = vmatpush.bf16.msra.mxu0 %v187
    %211 = vmatmul.bf16.gmra.mxu0 %v139
    %v212 = vpop.f32.mrf.mxu0
    %v213 = vadd.f32 %v105, %v212
    %v214 = vpop.f32.mrf.mxu0
    %v215 = vadd.f32 %v105, %v214
    %216 = vmatmul.bf16.gmra.mxu0 %v140
    %v217 = vpop.f32.mrf.mxu0
    %v218 = vadd.f32 %v105, %v217
    %v219 = vpop.f32.mrf.mxu0
    %v220 = vadd.f32 %v105, %v219
    %221 = vmatmul.bf16.gmra.mxu0 %v141
    %v222 = vpop.f32.mrf.mxu0
    %v223 = vadd.f32 %v105, %v222
    %v224 = vpop.f32.mrf.mxu0
    %v225 = vadd.f32 %v105, %v224
    %226 = vmatmul.bf16.gmra.mxu0 %v142
    %v227 = vpop.f32.mrf.mxu0
    %v228 = vadd.f32 %v105, %v227
    %v229 = vpop.f32.mrf.mxu0
    %v230 = vadd.f32 %v105, %v229
    %231 = vmatmul.bf16.gmra.mxu0 %v143
    %v232 = vpop.f32.mrf.mxu0
    %v233 = vadd.f32 %v105, %v232
    %v234 = vpop.f32.mrf.mxu0
    %v235 = vadd.f32 %v105, %v234
    %236 = vmatmul.bf16.gmra.mxu0 %v144
    %v237 = vpop.f32.mrf.mxu0
    %v238 = vadd.f32 %v105, %v237
    %v239 = vpop.f32.mrf.mxu0
    %v240 = vadd.f32 %v105, %v239
    %241 = vmatmul.bf16.gmra.mxu0 %v145
    %v242 = vpop.f32.mrf.mxu0
    %v243 = vadd.f32 %v105, %v242
    %v244 = vpop.f32.mrf.mxu0
    %v245 = vadd.f32 %v105, %v244
    %246 = vmatmul.bf16.gmra.mxu0 %v146
    %v247 = vpop.f32.mrf.mxu0
    %v248 = vadd.f32 %v105, %v247
    %v249 = vpop.f32.mrf.mxu0
    %v250 = vadd.f32 %v105, %v249
    %251 = vdwg.mxu0
    %v252 = vmax.f32 %v213, 0.0
    %v253 = vmax.f32 %v215, 0.0
    %v254 = vmax.f32 %v218, 0.0
    %v255 = vmax.f32 %v220, 0.0
    %v256 = vmax.f32 %v223, 0.0
    %v257 = vmax.f32 %v225, 0.0
    %v258 = vmax.f32 %v228, 0.0
    %v259 = vmax.f32 %v230, 0.0
    %v260 = vmax.f32 %v233, 0.0
    %v261 = vmax.f32 %v235, 0.0
    %v262 = vmax.f32 %v238, 0.0
    %v263 = vmax.f32 %v240, 0.0
    %v264 = vmax.f32 %v243, 0.0
    %v265 = vmax.f32 %v245, 0.0
    %v266 = vmax.f32 %v248, 0.0
    %v267 = vmax.f32 %v250, 0.0
    %v268 = vpack.c.bf16 %v253, %v252
    %v269 = vpack.c.bf16 %v255, %v254
    %v270 = vpack.c.bf16 %v257, %v256
    %v271 = vpack.c.bf16 %v259, %v258
    %v272 = vpack.c.bf16 %v261, %v260
    %v273 = vpack.c.bf16 %v263, %v262
    %v274 = vpack.c.bf16 %v265, %v264
    %v275 = vpack.c.bf16 %v267, %v266
    %v276 = vld [vmem:[#allocation7] sm:$0xf]
    %v277 = vld [vmem:[#allocation7 + $0x4] sm:$0xf]
    %v278 = vld [vmem:[#allocation7 + $0x8] sm:$0xf]
    %v279 = vld [vmem:[#allocation7 + $0xc] sm:$0xf]
    %v280 = vld [vmem:[#allocation7 + $0x10] sm:$0xf]
    %v281 = vld [vmem:[#allocation7 + $0x14] sm:$0xf]
    %v282 = vld [vmem:[#allocation7 + $0x18] sm:$0xf]
    %v283 = vld [vmem:[#allocation7 + $0x1c] sm:$0xf]
    %v284 = vld [vmem:[#allocation7 + $0x20] sm:$0xf]
    %v285 = vld [vmem:[#allocation7 + $0x24] sm:$0xf]
    %v286 = vld [vmem:[#allocation7 + $0x28] sm:$0xf]
    %v287 = vld [vmem:[#allocation7 + $0x2c] sm:$0xf]
    %v288 = vld [vmem:[#allocation7 + $0x30] sm:$0xf]
    %v289 = vld [vmem:[#allocation7 + $0x34] sm:$0xf]
    %v290 = vld [vmem:[#allocation7 + $0x38] sm:$0xf]
    %v291 = vld [vmem:[#allocation7 + $0x3c] sm:$0xf]
    %v292 = vld [vmem:[%s4] sm:$0x1]
    %v294 = vperm.slane %v292, 0
    %v312 = vunpack.c.l.b16 %v276
    %v313 = vunpack.c.l.b16 %v277
    %v314 = vunpack.c.l.b16 %v278
    %v315 = vunpack.c.l.b16 %v279
    %v316 = vunpack.c.l.b16 %v280
    %v317 = vunpack.c.l.b16 %v281
    %v318 = vunpack.c.l.b16 %v282
    %v319 = vunpack.c.l.b16 %v283
    %v320 = vunpack.c.l.b16 %v284
    %v321 = vunpack.c.l.b16 %v285
    %v322 = vunpack.c.l.b16 %v286
    %v323 = vunpack.c.l.b16 %v287
    %v324 = vunpack.c.l.b16 %v288
    %v325 = vunpack.c.l.b16 %v289
    %v326 = vunpack.c.l.b16 %v290
    %v327 = vunpack.c.l.b16 %v291
    %v328 = vpack.c.b16 %v313, %v312
    %v329 = vpack.c.b16 %v315, %v314
    %v330 = vpack.c.b16 %v317, %v316
    %v331 = vpack.c.b16 %v319, %v318
    %v332 = vpack.c.b16 %v321, %v320
    %v333 = vpack.c.b16 %v323, %v322
    %v334 = vpack.c.b16 %v325, %v324
    %v335 = vpack.c.b16 %v327, %v326
    %344 = vmatpush.bf16.msra.mxu0 %v335
    %345 = vmatpush.bf16.msra.mxu0 %v334
    %346 = vmatpush.bf16.msra.mxu0 %v333
    %347 = vmatpush.bf16.msra.mxu0 %v332
    %348 = vmatpush.bf16.msra.mxu0 %v331
    %349 = vmatpush.bf16.msra.mxu0 %v330
    %350 = vmatpush.bf16.msra.mxu0 %v329
    %351 = vmatpush.bf16.msra.mxu0 %v328
    %352 = vmatmul.bf16.gmra.mxu0 %v268
    %v353 = vpop.f32.mrf.mxu0
    %v354 = vadd.f32 %v294, %v353
    %v355 = vpop.f32.mrf.mxu0
    %v356 = vadd.f32 %v294, %v355
    %357 = vmatmul.bf16.gmra.mxu0 %v269
    %v358 = vpop.f32.mrf.mxu0
    %v359 = vadd.f32 %v294, %v358
    %v360 = vpop.f32.mrf.mxu0
    %v361 = vadd.f32 %v294, %v360
    %362 = vmatmul.bf16.gmra.mxu0 %v270
    %v363 = vpop.f32.mrf.mxu0
    %v364 = vadd.f32 %v294, %v363
    %v365 = vpop.f32.mrf.mxu0
    %v366 = vadd.f32 %v294, %v365
    %367 = vmatmul.bf16.gmra.mxu0 %v271
    %v368 = vpop.f32.mrf.mxu0
    %v369 = vadd.f32 %v294, %v368
    %v370 = vpop.f32.mrf.mxu0
    %v371 = vadd.f32 %v294, %v370
    %372 = vmatmul.bf16.gmra.mxu0 %v272
    %v373 = vpop.f32.mrf.mxu0
    %v374 = vadd.f32 %v294, %v373
    %v375 = vpop.f32.mrf.mxu0
    %v376 = vadd.f32 %v294, %v375
    %377 = vmatmul.bf16.gmra.mxu0 %v273
    %v378 = vpop.f32.mrf.mxu0
    %v379 = vadd.f32 %v294, %v378
    %v380 = vpop.f32.mrf.mxu0
    %v381 = vadd.f32 %v294, %v380
    %382 = vmatmul.bf16.gmra.mxu0 %v274
    %v383 = vpop.f32.mrf.mxu0
    %v384 = vadd.f32 %v294, %v383
    %v385 = vpop.f32.mrf.mxu0
    %v386 = vadd.f32 %v294, %v385
    %387 = vmatmul.bf16.gmra.mxu0 %v275
    %v388 = vpop.f32.mrf.mxu0
    %v389 = vadd.f32 %v294, %v388
    %v390 = vpop.f32.mrf.mxu0
    %v391 = vadd.f32 %v294, %v390
    %392 = vdwg.mxu0
    %393 = vmax.xlane.f32.xlu0 %v354
    %v394 = vpop.xlane.xlu0 %393
    %395 = vmax.xlane.f32.xlu0 %v356
    %v396 = vpop.xlane.xlu0 %395
    %397 = vmax.xlane.f32.xlu0 %v359
    %v398 = vpop.xlane.xlu0 %397
    %399 = vmax.xlane.f32.xlu0 %v361
    %v400 = vpop.xlane.xlu0 %399
    %401 = vmax.xlane.f32.xlu0 %v364
    %v402 = vpop.xlane.xlu0 %401
    %403 = vmax.xlane.f32.xlu0 %v366
    %v404 = vpop.xlane.xlu0 %403
    %405 = vmax.xlane.f32.xlu0 %v369
    %v406 = vpop.xlane.xlu0 %405
    %407 = vmax.xlane.f32.xlu0 %v371
    %v408 = vpop.xlane.xlu0 %407
    %409 = vmax.xlane.f32.xlu0 %v374
    %v410 = vpop.xlane.xlu0 %409
    %411 = vmax.xlane.f32.xlu0 %v376
    %v412 = vpop.xlane.xlu0 %411
    %413 = vmax.xlane.f32.xlu0 %v379
    %v414 = vpop.xlane.xlu0 %413
    %415 = vmax.xlane.f32.xlu0 %v381
    %v416 = vpop.xlane.xlu0 %415
    %417 = vmax.xlane.f32.xlu0 %v384
    %v418 = vpop.xlane.xlu0 %417
    %419 = vmax.xlane.f32.xlu0 %v386
    %v420 = vpop.xlane.xlu0 %419
    %421 = vmax.xlane.f32.xlu0 %v389
    %v422 = vpop.xlane.xlu0 %421
    %423 = vmax.xlane.f32.xlu0 %v391
    %v424 = vpop.xlane.xlu0 %423
    %v425 = vsub.f32 %v354, %v394
    %v426 = vsub.f32 %v356, %v396
    %v427 = vsub.f32 %v359, %v398
    %v428 = vsub.f32 %v361, %v400
    %v429 = vsub.f32 %v364, %v402
    %v430 = vsub.f32 %v366, %v404
    %v431 = vsub.f32 %v369, %v406
    %v432 = vsub.f32 %v371, %v408
    %v433 = vsub.f32 %v374, %v410
    %v434 = vsub.f32 %v376, %v412
    %v435 = vsub.f32 %v379, %v414
    %v436 = vsub.f32 %v381, %v416
    %v437 = vsub.f32 %v384, %v418
    %v438 = vsub.f32 %v386, %v420
    %v439 = vsub.f32 %v389, %v422
    %v440 = vsub.f32 %v391, %v424
    %v441 = vmul.f32 %v425, 1.442695
    %v442 = vpow.pop %v441
    %v443 = vmul.f32 %v426, 1.442695
    %v444 = vpow.pop %v443
    %v445 = vmul.f32 %v427, 1.442695
    %v446 = vpow.pop %v445
    %v447 = vmul.f32 %v428, 1.442695
    %v448 = vpow.pop %v447
    %v449 = vmul.f32 %v429, 1.442695
    %v450 = vpow.pop %v449
    %v451 = vmul.f32 %v430, 1.442695
    %v452 = vpow.pop %v451
    %v453 = vmul.f32 %v431, 1.442695
    %v454 = vpow.pop %v453
    %v455 = vmul.f32 %v432, 1.442695
    %v456 = vpow.pop %v455
    %v457 = vmul.f32 %v433, 1.442695
    %v458 = vpow.pop %v457
    %v459 = vmul.f32 %v434, 1.442695
    %v460 = vpow.pop %v459
    %v461 = vmul.f32 %v435, 1.442695
    %v462 = vpow.pop %v461
    %v463 = vmul.f32 %v436, 1.442695
    %v464 = vpow.pop %v463
    %v465 = vmul.f32 %v437, 1.442695
    %v466 = vpow.pop %v465
    %v467 = vmul.f32 %v438, 1.442695
    %v468 = vpow.pop %v467
    %v469 = vmul.f32 %v439, 1.442695
    %v470 = vpow.pop %v469
    %v471 = vmul.f32 %v440, 1.442695
    %v472 = vpow.pop %v471
    %473 = vadd.xlane.f32.xlu0 %v442
    %v474 = vpop.xlane.xlu0 %473
    %475 = vadd.xlane.f32.xlu0 %v444
    %v476 = vpop.xlane.xlu0 %475
    %477 = vadd.xlane.f32.xlu0 %v446
    %v478 = vpop.xlane.xlu0 %477
    %479 = vadd.xlane.f32.xlu0 %v448
    %v480 = vpop.xlane.xlu0 %479
    %481 = vadd.xlane.f32.xlu0 %v450
    %v482 = vpop.xlane.xlu0 %481
    %483 = vadd.xlane.f32.xlu0 %v452
    %v484 = vpop.xlane.xlu0 %483
    %485 = vadd.xlane.f32.xlu0 %v454
    %v486 = vpop.xlane.xlu0 %485
    %487 = vadd.xlane.f32.xlu0 %v456
    %v488 = vpop.xlane.xlu0 %487
    %489 = vadd.xlane.f32.xlu0 %v458
    %v490 = vpop.xlane.xlu0 %489
    %491 = vadd.xlane.f32.xlu0 %v460
    %v492 = vpop.xlane.xlu0 %491
    %493 = vadd.xlane.f32.xlu0 %v462
    %v494 = vpop.xlane.xlu0 %493
    %495 = vadd.xlane.f32.xlu0 %v464
    %v496 = vpop.xlane.xlu0 %495
    %497 = vadd.xlane.f32.xlu0 %v466
    %v498 = vpop.xlane.xlu0 %497
    %499 = vadd.xlane.f32.xlu0 %v468
    %v500 = vpop.xlane.xlu0 %499
    %501 = vadd.xlane.f32.xlu0 %v470
    %v502 = vpop.xlane.xlu0 %501
    %503 = vadd.xlane.f32.xlu0 %v472
    %v504 = vpop.xlane.xlu0 %503
    %v505 = vrcp.pop %v474
    %v506 = vmul.f32 %v474, %v505
    %v507 = vsub.f32 1.0, %v506
    %v508 = vmul.f32 %v505, %v507
    %v509 = vadd.f32 %v505, %v508
    %vm510 = vweird.f32 %v474
    %vm511 = vweird.f32 %v505
    %vm512 = vmor %vm510, %vm511
    %v513 = vsel %vm512, %v505, %v509
    %v514 = vand.u32 2147483647, %v474
    %vm515 = vcmp.eq.f32.partialorder %v514, 8.507059e+37
    %v516 = vand.u32 %v474, 2147483648
    %v517 = vor.u32 1.1754944e-38, %v516
    %v518 = vsel %vm515, %v517, %v513
    %v519 = vrcp.pop %v476
    %v520 = vmul.f32 %v476, %v519
    %v521 = vsub.f32 1.0, %v520
    %v522 = vmul.f32 %v519, %v521
    %v523 = vadd.f32 %v519, %v522
    %vm524 = vweird.f32 %v476
    %vm525 = vweird.f32 %v519
    %vm526 = vmor %vm524, %vm525
    %v527 = vsel %vm526, %v519, %v523
    %v528 = vand.u32 2147483647, %v476
    %vm529 = vcmp.eq.f32.partialorder %v528, 8.507059e+37
    %v530 = vand.u32 %v476, 2147483648
    %v531 = vor.u32 1.1754944e-38, %v530
    %v532 = vsel %vm529, %v531, %v527
    %v533 = vrcp.pop %v478
    %v534 = vmul.f32 %v478, %v533
    %v535 = vsub.f32 1.0, %v534
    %v536 = vmul.f32 %v533, %v535
    %v537 = vadd.f32 %v533, %v536
    %vm538 = vweird.f32 %v478
    %vm539 = vweird.f32 %v533
    %vm540 = vmor %vm538, %vm539
    %v541 = vsel %vm540, %v533, %v537
    %v542 = vand.u32 2147483647, %v478
    %vm543 = vcmp.eq.f32.partialorder %v542, 8.507059e+37
    %v544 = vand.u32 %v478, 2147483648
    %v545 = vor.u32 1.1754944e-38, %v544
    %v546 = vsel %vm543, %v545, %v541
    %v547 = vrcp.pop %v480
    %v548 = vmul.f32 %v480, %v547
    %v549 = vsub.f32 1.0, %v548
    %v550 = vmul.f32 %v547, %v549
    %v551 = vadd.f32 %v547, %v550
    %vm552 = vweird.f32 %v480
    %vm553 = vweird.f32 %v547
    %vm554 = vmor %vm552, %vm553
    %v555 = vsel %vm554, %v547, %v551
    %v556 = vand.u32 2147483647, %v480
    %vm557 = vcmp.eq.f32.partialorder %v556, 8.507059e+37
    %v558 = vand.u32 %v480, 2147483648
    %v559 = vor.u32 1.1754944e-38, %v558
    %v560 = vsel %vm557, %v559, %v555
    %v561 = vrcp.pop %v482
    %v562 = vmul.f32 %v482, %v561
    %v563 = vsub.f32 1.0, %v562
    %v564 = vmul.f32 %v561, %v563
    %v565 = vadd.f32 %v561, %v564
    %vm566 = vweird.f32 %v482
    %vm567 = vweird.f32 %v561
    %vm568 = vmor %vm566, %vm567
    %v569 = vsel %vm568, %v561, %v565
    %v570 = vand.u32 2147483647, %v482
    %vm571 = vcmp.eq.f32.partialorder %v570, 8.507059e+37
    %v572 = vand.u32 %v482, 2147483648
    %v573 = vor.u32 1.1754944e-38, %v572
    %v574 = vsel %vm571, %v573, %v569
    %v575 = vrcp.pop %v484
    %v576 = vmul.f32 %v484, %v575
    %v577 = vsub.f32 1.0, %v576
    %v578 = vmul.f32 %v575, %v577
    %v579 = vadd.f32 %v575, %v578
    %vm580 = vweird.f32 %v484
    %vm581 = vweird.f32 %v575
    %vm582 = vmor %vm580, %vm581
    %v583 = vsel %vm582, %v575, %v579
    %v584 = vand.u32 2147483647, %v484
    %vm585 = vcmp.eq.f32.partialorder %v584, 8.507059e+37
    %v586 = vand.u32 %v484, 2147483648
    %v587 = vor.u32 1.1754944e-38, %v586
    %v588 = vsel %vm585, %v587, %v583
    %v589 = vrcp.pop %v486
    %v590 = vmul.f32 %v486, %v589
    %v591 = vsub.f32 1.0, %v590
    %v592 = vmul.f32 %v589, %v591
    %v593 = vadd.f32 %v589, %v592
    %vm594 = vweird.f32 %v486
    %vm595 = vweird.f32 %v589
    %vm596 = vmor %vm594, %vm595
    %v597 = vsel %vm596, %v589, %v593
    %v598 = vand.u32 2147483647, %v486
    %vm599 = vcmp.eq.f32.partialorder %v598, 8.507059e+37
    %v600 = vand.u32 %v486, 2147483648
    %v601 = vor.u32 1.1754944e-38, %v600
    %v602 = vsel %vm599, %v601, %v597
    %v603 = vrcp.pop %v488
    %v604 = vmul.f32 %v488, %v603
    %v605 = vsub.f32 1.0, %v604
    %v606 = vmul.f32 %v603, %v605
    %v607 = vadd.f32 %v603, %v606
    %vm608 = vweird.f32 %v488
    %vm609 = vweird.f32 %v603
    %vm610 = vmor %vm608, %vm609
    %v611 = vsel %vm610, %v603, %v607
    %v612 = vand.u32 2147483647, %v488
    %vm613 = vcmp.eq.f32.partialorder %v612, 8.507059e+37
    %v614 = vand.u32 %v488, 2147483648
    %v615 = vor.u32 1.1754944e-38, %v614
    %v616 = vsel %vm613, %v615, %v611
    %v617 = vrcp.pop %v490
    %v618 = vmul.f32 %v490, %v617
    %v619 = vsub.f32 1.0, %v618
    %v620 = vmul.f32 %v617, %v619
    %v621 = vadd.f32 %v617, %v620
    %vm622 = vweird.f32 %v490
    %vm623 = vweird.f32 %v617
    %vm624 = vmor %vm622, %vm623
    %v625 = vsel %vm624, %v617, %v621
    %v626 = vand.u32 2147483647, %v490
    %vm627 = vcmp.eq.f32.partialorder %v626, 8.507059e+37
    %v628 = vand.u32 %v490, 2147483648
    %v629 = vor.u32 1.1754944e-38, %v628
    %v630 = vsel %vm627, %v629, %v625
    %v631 = vrcp.pop %v492
    %v632 = vmul.f32 %v492, %v631
    %v633 = vsub.f32 1.0, %v632
    %v634 = vmul.f32 %v631, %v633
    %v635 = vadd.f32 %v631, %v634
    %vm636 = vweird.f32 %v492
    %vm637 = vweird.f32 %v631
    %vm638 = vmor %vm636, %vm637
    %v639 = vsel %vm638, %v631, %v635
    %v640 = vand.u32 2147483647, %v492
    %vm641 = vcmp.eq.f32.partialorder %v640, 8.507059e+37
    %v642 = vand.u32 %v492, 2147483648
    %v643 = vor.u32 1.1754944e-38, %v642
    %v644 = vsel %vm641, %v643, %v639
    %v645 = vrcp.pop %v494
    %v646 = vmul.f32 %v494, %v645
    %v647 = vsub.f32 1.0, %v646
    %v648 = vmul.f32 %v645, %v647
    %v649 = vadd.f32 %v645, %v648
    %vm650 = vweird.f32 %v494
    %vm651 = vweird.f32 %v645
    %vm652 = vmor %vm650, %vm651
    %v653 = vsel %vm652, %v645, %v649
    %v654 = vand.u32 2147483647, %v494
    %vm655 = vcmp.eq.f32.partialorder %v654, 8.507059e+37
    %v656 = vand.u32 %v494, 2147483648
    %v657 = vor.u32 1.1754944e-38, %v656
    %v658 = vsel %vm655, %v657, %v653
    %v659 = vrcp.pop %v496
    %v660 = vmul.f32 %v496, %v659
    %v661 = vsub.f32 1.0, %v660
    %v662 = vmul.f32 %v659, %v661
    %v663 = vadd.f32 %v659, %v662
    %vm664 = vweird.f32 %v496
    %vm665 = vweird.f32 %v659
    %vm666 = vmor %vm664, %vm665
    %v667 = vsel %vm666, %v659, %v663
    %v668 = vand.u32 2147483647, %v496
    %vm669 = vcmp.eq.f32.partialorder %v668, 8.507059e+37
    %v670 = vand.u32 %v496, 2147483648
    %v671 = vor.u32 1.1754944e-38, %v670
    %v672 = vsel %vm669, %v671, %v667
    %v673 = vrcp.pop %v498
    %v674 = vmul.f32 %v498, %v673
    %v675 = vsub.f32 1.0, %v674
    %v676 = vmul.f32 %v673, %v675
    %v677 = vadd.f32 %v673, %v676
    %vm678 = vweird.f32 %v498
    %vm679 = vweird.f32 %v673
    %vm680 = vmor %vm678, %vm679
    %v681 = vsel %vm680, %v673, %v677
    %v682 = vand.u32 2147483647, %v498
    %vm683 = vcmp.eq.f32.partialorder %v682, 8.507059e+37
    %v684 = vand.u32 %v498, 2147483648
    %v685 = vor.u32 1.1754944e-38, %v684
    %v686 = vsel %vm683, %v685, %v681
    %v687 = vrcp.pop %v500
    %v688 = vmul.f32 %v500, %v687
    %v689 = vsub.f32 1.0, %v688
    %v690 = vmul.f32 %v687, %v689
    %v691 = vadd.f32 %v687, %v690
    %vm692 = vweird.f32 %v500
    %vm693 = vweird.f32 %v687
    %vm694 = vmor %vm692, %vm693
    %v695 = vsel %vm694, %v687, %v691
    %v696 = vand.u32 2147483647, %v500
    %vm697 = vcmp.eq.f32.partialorder %v696, 8.507059e+37
    %v698 = vand.u32 %v500, 2147483648
    %v699 = vor.u32 1.1754944e-38, %v698
    %v700 = vsel %vm697, %v699, %v695
    %v701 = vrcp.pop %v502
    %v702 = vmul.f32 %v502, %v701
    %v703 = vsub.f32 1.0, %v702
    %v704 = vmul.f32 %v701, %v703
    %v705 = vadd.f32 %v701, %v704
    %vm706 = vweird.f32 %v502
    %vm707 = vweird.f32 %v701
    %vm708 = vmor %vm706, %vm707
    %v709 = vsel %vm708, %v701, %v705
    %v710 = vand.u32 2147483647, %v502
    %vm711 = vcmp.eq.f32.partialorder %v710, 8.507059e+37
    %v712 = vand.u32 %v502, 2147483648
    %v713 = vor.u32 1.1754944e-38, %v712
    %v714 = vsel %vm711, %v713, %v709
    %v715 = vrcp.pop %v504
    %v716 = vmul.f32 %v504, %v715
    %v717 = vsub.f32 1.0, %v716
    %v718 = vmul.f32 %v715, %v717
    %v719 = vadd.f32 %v715, %v718
    %vm720 = vweird.f32 %v504
    %vm721 = vweird.f32 %v715
    %vm722 = vmor %vm720, %vm721
    %v723 = vsel %vm722, %v715, %v719
    %v724 = vand.u32 2147483647, %v504
    %vm725 = vcmp.eq.f32.partialorder %v724, 8.507059e+37
    %v726 = vand.u32 %v504, 2147483648
    %v727 = vor.u32 1.1754944e-38, %v726
    %v728 = vsel %vm725, %v727, %v723
    %v729 = vmul.f32 %v442, %v518
    %v730 = vmul.f32 %v444, %v532
    %v731 = vmul.f32 %v446, %v546
    %v732 = vmul.f32 %v448, %v560
    %v733 = vmul.f32 %v450, %v574
    %v734 = vmul.f32 %v452, %v588
    %v735 = vmul.f32 %v454, %v602
    %v736 = vmul.f32 %v456, %v616
    %v737 = vmul.f32 %v458, %v630
    %v738 = vmul.f32 %v460, %v644
    %v739 = vmul.f32 %v462, %v658
    %v740 = vmul.f32 %v464, %v672
    %v741 = vmul.f32 %v466, %v686
    %v742 = vmul.f32 %v468, %v700
    %v743 = vmul.f32 %v470, %v714
    %v744 = vmul.f32 %v472, %v728
    %745 = vst [vmem:[#allocation8] sm:$0xff] %v729
    %746 = vst [vmem:[#allocation8 + $0x8] sm:$0xff] %v730
    %747 = vst [vmem:[#allocation8 + $0x10] sm:$0xff] %v731
    %748 = vst [vmem:[#allocation8 + $0x18] sm:$0xff] %v732
    %749 = vst [vmem:[#allocation8 + $0x20] sm:$0xff] %v733
    %750 = vst [vmem:[#allocation8 + $0x28] sm:$0xff] %v734
    %751 = vst [vmem:[#allocation8 + $0x30] sm:$0xff] %v735
    %752 = vst [vmem:[#allocation8 + $0x38] sm:$0xff] %v736
    %753 = vst [vmem:[#allocation8 + $0x40] sm:$0xff] %v737
    %754 = vst [vmem:[#allocation8 + $0x48] sm:$0xff] %v738
    %755 = vst [vmem:[#allocation8 + $0x50] sm:$0xff] %v739
    %756 = vst [vmem:[#allocation8 + $0x58] sm:$0xff] %v740
    %757 = vst [vmem:[#allocation8 + $0x60] sm:$0xff] %v741
    %758 = vst [vmem:[#allocation8 + $0x68] sm:$0xff] %v742
    %759 = vst [vmem:[#allocation8 + $0x70] sm:$0xff] %v743
    %760 = vst [vmem:[#allocation8 + $0x78] sm:$0xff] %v744
    %v761 = vpack.c.bf16 %v729, %v729
    %v762 = vpack.c.bf16 %v730, %v730
    %v763 = vpack.c.bf16 %v731, %v731
    %v764 = vpack.c.bf16 %v732, %v732
    %v765 = vpack.c.bf16 %v733, %v733
    %v766 = vpack.c.bf16 %v734, %v734
    %v767 = vpack.c.bf16 %v735, %v735
    %v768 = vpack.c.bf16 %v736, %v736
    %v769 = vpack.c.bf16 %v737, %v737
    %v770 = vpack.c.bf16 %v738, %v738
    %v771 = vpack.c.bf16 %v739, %v739
    %v772 = vpack.c.bf16 %v740, %v740
    %v773 = vpack.c.bf16 %v741, %v741
    %v774 = vpack.c.bf16 %v742, %v742
    %v775 = vpack.c.bf16 %v743, %v743
    %v776 = vpack.c.bf16 %v744, %v744
    %777 = vst [vmem:[#allocation9] sm:$0xf] %v761
    %778 = vst [vmem:[#allocation9 + $0x4] sm:$0xf] %v762
    %779 = vst [vmem:[#allocation9 + $0x8] sm:$0xf] %v763
    %780 = vst [vmem:[#allocation9 + $0xc] sm:$0xf] %v764
    %781 = vst [vmem:[#allocation9 + $0x10] sm:$0xf] %v765
    %782 = vst [vmem:[#allocation9 + $0x14] sm:$0xf] %v766
    %783 = vst [vmem:[#allocation9 + $0x18] sm:$0xf] %v767
    %784 = vst [vmem:[#allocation9 + $0x1c] sm:$0xf] %v768
    %785 = vst [vmem:[#allocation9 + $0x20] sm:$0xf] %v769
    %786 = vst [vmem:[#allocation9 + $0x24] sm:$0xf] %v770
    %787 = vst [vmem:[#allocation9 + $0x28] sm:$0xf] %v771
    %788 = vst [vmem:[#allocation9 + $0x2c] sm:$0xf] %v772
    %789 = vst [vmem:[#allocation9 + $0x30] sm:$0xf] %v773
    %790 = vst [vmem:[#allocation9 + $0x34] sm:$0xf] %v774
    %791 = vst [vmem:[#allocation9 + $0x38] sm:$0xf] %v775
    %792 = vst [vmem:[#allocation9 + $0x3c] sm:$0xf] %v776
    // Predicated region
    $region34: #{tpu_custom_call.1} parent=1 // pred_check
      _
    $region35: #{tpu_custom_call.1} parent=1 // pred_check_branch
      %794 = sbr.rel (0) target = $region37
    $region36: #{tpu_custom_call.1} parent=1 // pred_region
      %796 = vsyncadd [#allocation4], 0
      %s797 = sshll.u32 [#allocation8], 4
      %s798 = int_to_ptr.vmem [resolvable:$true] %s797
      %s799 = sshll.u32 %s5, 4
      %s800 = int_to_ptr.hbm [resolvable:$true] %s799
      %805 = dma.vmem_to_hbm [thread:$0]  %s798, 2048, %s800, [#allocation4], 128, 128, 8
    $region37: #{tpu_custom_call.1} parent=1 // pred_fallthru
      _
    // Predicated region
    $region38: #{tpu_custom_call.1} parent=1 // pred_check
      _
    $region39: #{tpu_custom_call.1} parent=1 // pred_check_branch
      %807 = sbr.rel (0) target = $region41
    $region40: #{tpu_custom_call.1} parent=1 // pred_region
      %809 = vsyncadd [#allocation10], 0
      %s810 = sshll.u32 [#allocation9], 4
      %s811 = int_to_ptr.vmem [resolvable:$true] %s810
      %s812 = sshll.u32 %s6, 4
      %s813 = int_to_ptr.hbm [resolvable:$true] %s812
      %818 = dma.vmem_to_hbm [thread:$0]  %s811, 1024, %s813, [#allocation10], 64, 64, 4
    $region41: #{tpu_custom_call.1} parent=1 // pred_fallthru
      _
    // Predicated region
    $region42: #{tpu_custom_call.1} parent=1 // pred_check
      _
    $region43: #{tpu_custom_call.1} parent=1 // pred_check_branch
      %820 = sbr.rel (0) target = $region45
    $region44: #{tpu_custom_call.1} parent=1 // pred_region
      %822 = dma.done [#allocation4], 2048
    $region45: #{tpu_custom_call.1} parent=1 // pred_fallthru
      _
    // Predicated region
    $region46: #{tpu_custom_call.1} parent=1 // pred_check
      _
    $region47: #{tpu_custom_call.1} parent=1 // pred_check_branch
      %824 = sbr.rel (0) target = $region49
    $region48: #{tpu_custom_call.1} parent=1 // pred_region
      %826 = dma.done [#allocation10], 1024
    $region49: #{tpu_custom_call.1} parent=1 // pred_fallthru
      _
    %827 = vsyncpa [#allocation3], 1
    %828 = vsyncpa [#allocation6], 1
    %829 = vsyncpa [#allocation4], 1
    %830 = vsyncpa [#allocation10], 1

</llo_original>
